<compile_context>
chip_gen: v6e
topology: v6e:2x2x1
jax: 0.10.0
libtpu: 0.0.40
codegen_flags: <defaults>
</compile_context>

<pallas_src>
import functools

import jax
import jax.numpy as jnp
from jax.experimental import pallas as pl
from jax.experimental.pallas import tpu as pltpu

L1_OUT = 170
L2_OUT = 100
L3_OUT = 50
L4_OUT = 20

_LANE = 128
_SUBLANE = 8


def _round_up(n, m):
    return (n + m - 1) // m * m


def _cdiv(a, b):
    return -(-a // b)


# ----------------------------------------------------------------------------
# Kernel
# ----------------------------------------------------------------------------
def _mlp_kernel(x_ref,
                w1_ref, b1_ref,
                w2_ref, b2_ref,
                w3_ref, b3_ref,
                w4_ref, b4_ref,
                w5_ref, b5_ref,
                o_ref):
    """One (TB, F_in) batch tile through all 5 layers; weights resident in VMEM."""

    def linear(h, w_ref, b_ref):
        lhs = h if h.dtype == jnp.bfloat16 else h.astype(jnp.bfloat16)
        # bf16 x bf16 on the MXU, f32 accumulate; f32 bias add on the VPU.
        return jnp.dot(lhs, w_ref[...],
                       preferred_element_type=jnp.float32) + b_ref[...]

    h = x_ref[...]                                   # bf16 already (cast in wrapper)
    h = jnp.maximum(linear(h, w1_ref, b1_ref), 0.0)
    h = jnp.maximum(linear(h, w2_ref, b2_ref), 0.0)
    h = jnp.maximum(linear(h, w3_ref, b3_ref), 0.0)
    h = jnp.maximum(linear(h, w4_ref, b4_ref), 0.0)
    h = linear(h, w5_ref, b5_ref)                    # (TB, out_dim), unpadded N
    # Exact sigmoid: output tile is tiny, so the real divide is negligible.
    o_ref[...] = (1.0 / (1.0 + jnp.exp(-h))).astype(o_ref.dtype)


# ----------------------------------------------------------------------------
# Parameter construction / padding
# ----------------------------------------------------------------------------
def init_params(key, size_input, size_output):
    """PyTorch-style nn.Linear init: U(-1/sqrt(fan_in), 1/sqrt(fan_in)).

    Weights stored as (in, out) == PyTorch weight.T; biases as (1, out). f32.
    """
    dims = [size_input, L1_OUT, L2_OUT, L3_OUT, L4_OUT, size_output]
    params = []
    for i in range(5):
        fan_in, fan_out = dims[i], dims[i + 1]
        key, kw, kb = jax.random.split(key, 3)
        bound = 1.0 / jnp.sqrt(fan_in)
        w = jax.random.uniform(kw, (fan_in, fan_out), jnp.float32, -bound, bound)
        b = jax.random.uniform(kb, (1, fan_out), jnp.float32, -bound, bound)
        params.append((w, b))
    return params


def pad_params(params):
    """Lane-pad hidden widths to multiples of 128; keep the LAST layer's output
    dim unpadded (the kernel writes a narrow output block). Weights -> bf16.

    Padding is numerically exact: extra weight rows multiply zero activations,
    extra columns have zero weights + zero bias, and ReLU keeps them at 0.
    Returns (padded_params, true_out_dim).
    """
    n = len(params)
    padded = []
    in_dim = params[0][0].shape[0]          # input features stay unpadded (K=32)
    for i, (w, b) in enumerate(params):
        fan_in, fan_out = w.shape
        out_pad = fan_out if i == n - 1 else _round_up(fan_out, _LANE)
        wp = jnp.zeros((in_dim, out_pad), jnp.float32)
        wp = wp.at[:fan_in, :fan_out].set(w)
        bp = jnp.zeros((1, out_pad), jnp.float32)
        bp = bp.at[:, :fan_out].set(b)
        padded.append((wp.astype(jnp.bfloat16), bp))
        in_dim = out_pad
    return padded, params[-1][0].shape[1]


# ----------------------------------------------------------------------------
# Tiling / VMEM budgeting
# ----------------------------------------------------------------------------
def _choose_tiling(B, tb_max):
    """TB ~ round_up(cdiv(B, n_steps), 8), n_steps even when >1 (v7x megacore)."""
    n_steps = _cdiv(B, tb_max)
    if n_steps > 1 and n_steps % 2:
        n_steps += 1
    TB = _round_up(_cdiv(B, n_steps), _SUBLANE)
    n_steps = _cdiv(B, TB)
    if n_steps > 1 and n_steps % 2:
        n_steps += 1
    Bp = n_steps * TB
    return TB, Bp, n_steps


def _vmem_limit_bytes(TB, F_in, out_dim, padded_params):
    """Rough per-step VMEM footprint; only request a raise when it matters."""
    wb = sum(int(w.size) * w.dtype.itemsize + int(b.size) * b.dtype.itemsize
             for w, b in padded_params)
    io = 2 * TB * F_in * 2 + 2 * TB * out_dim * 4        # double-buffered x / out
    inter = sum(TB * int(w.shape[1]) * (4 + 2) for w, _ in padded_params)
    need = 2 * wb + io + inter + (4 << 20)                # + headroom
    if need <= (16 << 20):                                # v5e scoped default OK
        return None
    return int(min(need, 60 << 20))                       # stay under v7x's 64 MiB


# ----------------------------------------------------------------------------
# Wrapper
# ----------------------------------------------------------------------------
@functools.partial(jax.jit, static_argnames=("out_dim", "tb_max"))
def net_forward(x, padded_params, out_dim, *, tb_max=2048):
    """Run the fused MLP kernel. x: (B, F) f32. Returns (B, out_dim) f32."""
    B, F_in = x.shape

    TB, Bp, n_steps = _choose_tiling(B, tb_max)

    # Cast x once (layer-1 LHS is bf16 on the MXU anyway): halves the x read.
    x = x.astype(jnp.bfloat16)
    if Bp != B:
        x = jnp.pad(x, ((0, Bp - B), (0, 0)))

    flat = [x]
    for w, b in padded_params:
        flat.extend([w, b])

    # x / out stream over the batch grid; weights & biases pin block (0, 0) so
    # Pallas keeps them resident in VMEM across grid steps. (All operands are
    # 2-D full-array blocks, so a shared constant index_map is safe.)
    x_spec = pl.BlockSpec((TB, F_in), lambda i: (i, 0))
    wb_specs = [pl.BlockSpec(a.shape, lambda i: (0, 0)) for a in flat[1:]]
    out_spec = pl.BlockSpec((TB, out_dim), lambda i: (i, 0))

    flops = 2 * Bp * sum(int(w.shape[0]) * int(w.shape[1])
                         for w, _ in padded_params)
    bytes_accessed = (
        int(x.size) * x.dtype.itemsize
        + sum(int(w.size) * w.dtype.itemsize + int(b.size) * b.dtype.itemsize
              for w, b in padded_params)
        + Bp * out_dim * 4)
    cost = pl.CostEstimate(flops=flops,
                           transcendentals=Bp * out_dim,
                           bytes_accessed=bytes_accessed)

    y = pl.pallas_call(
        _mlp_kernel,
        out_shape=jax.ShapeDtypeStruct((Bp, out_dim), jnp.float32),
        grid_spec=pl.GridSpec(
            grid=(n_steps,),
            in_specs=[x_spec] + wb_specs,
            out_specs=out_spec,
        ),
        compiler_params=pltpu.CompilerParams(
            dimension_semantics=("parallel",),       # shards batch over v7x's 2 TCs
            vmem_limit_bytes=_vmem_limit_bytes(TB, F_in, out_dim, padded_params)),
        cost_estimate=cost,
    )(*flat)

    # Only batch-row padding to strip; columns are already exact.
    return y[:B] if Bp != B else y


# ----------------------------------------------------------------------------
# References
# ----------------------------------------------------------------------------
def reference_forward_matched(x, padded_params, out_dim):
    """Pure-JAX reference with the SAME numerics as the kernel."""
    h = x.astype(jnp.bfloat16)
    n = len(padded_params)
    for i, (w, b) in enumerate(padded_params):
        h = jnp.dot(h if h.dtype == jnp.bfloat16 else h.astype(jnp.bfloat16), w,
                    preferred_element_type=jnp.float32) + b
        h = jnp.maximum(h, 0.0) if i < n - 1 else 1.0 / (1.0 + jnp.exp(-h))
    return h[:, :out_dim]


def reference_forward_f32(x, params):
    """Full-precision reference matching the PyTorch module exactly."""
    h = x
    for i, (w, b) in enumerate(params):
        h = h @ w + b
        h = jnp.maximum(h, 0.0) if i < 4 else jax.nn.sigmoid(h)
    return h


# ----------------------------------------------------------------------------
if __name__ == "__main__":
    size_input = 32
    size_output = 10
    batch = 8

    key = jax.random.PRNGKey(0)
    key, kx = jax.random.split(key)
    x = jax.random.normal(kx, (batch, size_input), jnp.float32)

    params = init_params(key, size_input, size_output)
    padded_params, out_dim = pad_params(params)

    out = jax.block_until_ready(net_forward(x, padded_params, out_dim))
    assert out.shape == (batch, size_output), out.shape

    # Tight check vs a precision-matched reference (identical numerics).
    ref_m = reference_forward_matched(x, padded_params, out_dim)
    assert jnp.allclose(out, ref_m, atol=1e-3, rtol=1e-3), "mismatch vs matched ref"

    # Loose check vs the full-f32 PyTorch-equivalent forward (bf16 MXU tolerance).
    ref_f = reference_forward_f32(x, params)
    assert jnp.allclose(out, ref_f, atol=5e-2, rtol=5e-2), "mismatch vs f32 ref"

    print("KERNEL_OK")
</pallas_src>

<mosaic_0001>
module attributes {stable_mosaic.version = 11 : i64} {
  func.func @_mlp_kernel(%arg0: i32, %arg1: memref<8x32xbf16, #tpu.memory_space<vmem>>, %arg2: memref<32x256xbf16, #tpu.memory_space<vmem>>, %arg3: memref<1x256xf32, #tpu.memory_space<vmem>>, %arg4: memref<256x128xbf16, #tpu.memory_space<vmem>>, %arg5: memref<1x128xf32, #tpu.memory_space<vmem>>, %arg6: memref<128x128xbf16, #tpu.memory_space<vmem>>, %arg7: memref<1x128xf32, #tpu.memory_space<vmem>>, %arg8: memref<128x128xbf16, #tpu.memory_space<vmem>>, %arg9: memref<1x128xf32, #tpu.memory_space<vmem>>, %arg10: memref<128x10xbf16, #tpu.memory_space<vmem>>, %arg11: memref<1x10xf32, #tpu.memory_space<vmem>>, %arg12: memref<8x10xf32, #tpu.memory_space<vmem>>) attributes {dimension_semantics = [#tpu.dimension_semantics<parallel>], iteration_bounds = array<i64: 1>, scalar_prefetch = 0 : i64, scratch_operands = 0 : i64, tpu.core_type = #tpu.core_type<tc>, window_params = [{transform_indices = @transform_0, window_bounds = array<i64: 8, 32>}, {pipeline_mode = #tpu.pipeline_mode<synchronous>, transform_indices = @transform_1, window_bounds = array<i64: 32, 256>}, {pipeline_mode = #tpu.pipeline_mode<synchronous>, transform_indices = @transform_2, window_bounds = array<i64: 1, 256>}, {pipeline_mode = #tpu.pipeline_mode<synchronous>, transform_indices = @transform_3, window_bounds = array<i64: 256, 128>}, {pipeline_mode = #tpu.pipeline_mode<synchronous>, transform_indices = @transform_4, window_bounds = array<i64: 1, 128>}, {pipeline_mode = #tpu.pipeline_mode<synchronous>, transform_indices = @transform_5, window_bounds = array<i64: 128, 128>}, {pipeline_mode = #tpu.pipeline_mode<synchronous>, transform_indices = @transform_6, window_bounds = array<i64: 1, 128>}, {pipeline_mode = #tpu.pipeline_mode<synchronous>, transform_indices = @transform_7, window_bounds = array<i64: 128, 128>}, {pipeline_mode = #tpu.pipeline_mode<synchronous>, transform_indices = @transform_8, window_bounds = array<i64: 1, 128>}, {pipeline_mode = #tpu.pipeline_mode<synchronous>, transform_indices = @transform_9, window_bounds = array<i64: 128, 10>}, {pipeline_mode = #tpu.pipeline_mode<synchronous>, transform_indices = @transform_10, window_bounds = array<i64: 1, 10>}, {transform_indices = @transform_11, window_bounds = array<i64: 8, 10>}]} {
    %c0 = arith.constant 0 : index
    %c0_0 = arith.constant 0 : index
    %0 = vector.load %arg1[%c0, %c0_0] : memref<8x32xbf16, #tpu.memory_space<vmem>>, vector<8x32xbf16>
    %c0_1 = arith.constant 0 : index
    %c0_2 = arith.constant 0 : index
    %1 = vector.load %arg2[%c0_1, %c0_2] : memref<32x256xbf16, #tpu.memory_space<vmem>>, vector<32x256xbf16>
    %cst = arith.constant dense<0.000000e+00> : vector<8x256xf32>
    %2 = tpu.matmul %0, %1, %cst {dimension_numbers = #tpu.dot_dimension_numbers<[1], [0], [0], [1], [0, 0, 1, 1], [], []>} : vector<8x32xbf16>, vector<32x256xbf16>, vector<8x256xf32> -> vector<8x256xf32>
    %c0_3 = arith.constant 0 : index
    %c0_4 = arith.constant 0 : index
    %3 = vector.load %arg3[%c0_3, %c0_4] : memref<1x256xf32, #tpu.memory_space<vmem>>, vector<1x256xf32>
    %4 = vector.broadcast %3 : vector<1x256xf32> to vector<8x256xf32>
    %5 = arith.addf %2, %4 : vector<8x256xf32>
    %cst_5 = arith.constant 0.000000e+00 : f32
    %6 = vector.broadcast %cst_5 : f32 to vector<8x256xf32>
    %7 = arith.maximumf %5, %6 : vector<8x256xf32>
    %8 = arith.truncf %7 : vector<8x256xf32> to vector<8x256xbf16>
    %c0_6 = arith.constant 0 : index
    %c0_7 = arith.constant 0 : index
    %9 = vector.load %arg4[%c0_6, %c0_7] : memref<256x128xbf16, #tpu.memory_space<vmem>>, vector<256x128xbf16>
    %cst_8 = arith.constant dense<0.000000e+00> : vector<8x128xf32>
    %10 = tpu.matmul %8, %9, %cst_8 {dimension_numbers = #tpu.dot_dimension_numbers<[1], [0], [0], [1], [0, 0, 1, 1], [], []>} : vector<8x256xbf16>, vector<256x128xbf16>, vector<8x128xf32> -> vector<8x128xf32>
    %c0_9 = arith.constant 0 : index
    %c0_10 = arith.constant 0 : index
    %11 = vector.load %arg5[%c0_9, %c0_10] : memref<1x128xf32, #tpu.memory_space<vmem>>, vector<1x128xf32>
    %12 = vector.broadcast %11 : vector<1x128xf32> to vector<8x128xf32>
    %13 = arith.addf %10, %12 : vector<8x128xf32>
    %cst_11 = arith.constant 0.000000e+00 : f32
    %14 = vector.broadcast %cst_11 : f32 to vector<8x128xf32>
    %15 = arith.maximumf %13, %14 : vector<8x128xf32>
    %16 = arith.truncf %15 : vector<8x128xf32> to vector<8x128xbf16>
    %c0_12 = arith.constant 0 : index
    %c0_13 = arith.constant 0 : index
    %17 = vector.load %arg6[%c0_12, %c0_13] : memref<128x128xbf16, #tpu.memory_space<vmem>>, vector<128x128xbf16>
    %cst_14 = arith.constant dense<0.000000e+00> : vector<8x128xf32>
    %18 = tpu.matmul %16, %17, %cst_14 {dimension_numbers = #tpu.dot_dimension_numbers<[1], [0], [0], [1], [0, 0, 1, 1], [], []>} : vector<8x128xbf16>, vector<128x128xbf16>, vector<8x128xf32> -> vector<8x128xf32>
    %c0_15 = arith.constant 0 : index
    %c0_16 = arith.constant 0 : index
    %19 = vector.load %arg7[%c0_15, %c0_16] : memref<1x128xf32, #tpu.memory_space<vmem>>, vector<1x128xf32>
    %20 = vector.broadcast %19 : vector<1x128xf32> to vector<8x128xf32>
    %21 = arith.addf %18, %20 : vector<8x128xf32>
    %cst_17 = arith.constant 0.000000e+00 : f32
    %22 = vector.broadcast %cst_17 : f32 to vector<8x128xf32>
    %23 = arith.maximumf %21, %22 : vector<8x128xf32>
    %24 = arith.truncf %23 : vector<8x128xf32> to vector<8x128xbf16>
    %c0_18 = arith.constant 0 : index
    %c0_19 = arith.constant 0 : index
    %25 = vector.load %arg8[%c0_18, %c0_19] : memref<128x128xbf16, #tpu.memory_space<vmem>>, vector<128x128xbf16>
    %cst_20 = arith.constant dense<0.000000e+00> : vector<8x128xf32>
    %26 = tpu.matmul %24, %25, %cst_20 {dimension_numbers = #tpu.dot_dimension_numbers<[1], [0], [0], [1], [0, 0, 1, 1], [], []>} : vector<8x128xbf16>, vector<128x128xbf16>, vector<8x128xf32> -> vector<8x128xf32>
    %c0_21 = arith.constant 0 : index
    %c0_22 = arith.constant 0 : index
    %27 = vector.load %arg9[%c0_21, %c0_22] : memref<1x128xf32, #tpu.memory_space<vmem>>, vector<1x128xf32>
    %28 = vector.broadcast %27 : vector<1x128xf32> to vector<8x128xf32>
    %29 = arith.addf %26, %28 : vector<8x128xf32>
    %cst_23 = arith.constant 0.000000e+00 : f32
    %30 = vector.broadcast %cst_23 : f32 to vector<8x128xf32>
    %31 = arith.maximumf %29, %30 : vector<8x128xf32>
    %32 = arith.truncf %31 : vector<8x128xf32> to vector<8x128xbf16>
    %c0_24 = arith.constant 0 : index
    %c0_25 = arith.constant 0 : index
    %33 = vector.load %arg10[%c0_24, %c0_25] : memref<128x10xbf16, #tpu.memory_space<vmem>>, vector<128x10xbf16>
    %cst_26 = arith.constant dense<0.000000e+00> : vector<8x10xf32>
    %34 = tpu.matmul %32, %33, %cst_26 {dimension_numbers = #tpu.dot_dimension_numbers<[1], [0], [0], [1], [0, 0, 1, 1], [], []>} : vector<8x128xbf16>, vector<128x10xbf16>, vector<8x10xf32> -> vector<8x10xf32>
    %c0_27 = arith.constant 0 : index
    %c0_28 = arith.constant 0 : index
    %35 = vector.load %arg11[%c0_27, %c0_28] : memref<1x10xf32, #tpu.memory_space<vmem>>, vector<1x10xf32>
    %36 = vector.broadcast %35 : vector<1x10xf32> to vector<8x10xf32>
    %37 = arith.addf %34, %36 : vector<8x10xf32>
    %cst_29 = arith.constant 0.000000e+00 : f32
    %38 = vector.broadcast %cst_29 : f32 to vector<8x10xf32>
    %39 = arith.subf %38, %37 : vector<8x10xf32>
    %40 = math.exp %39 : vector<8x10xf32>
    %cst_30 = arith.constant 1.000000e+00 : f32
    %41 = vector.broadcast %cst_30 : f32 to vector<8x10xf32>
    %42 = arith.addf %41, %40 : vector<8x10xf32>
    %cst_31 = arith.constant 1.000000e+00 : f32
    %43 = vector.broadcast %cst_31 : f32 to vector<8x10xf32>
    %44 = arith.divf %43, %42 : vector<8x10xf32>
    %c0_32 = arith.constant 0 : index
    %c0_33 = arith.constant 0 : index
    %45 = vector.load %arg12[%c0_32, %c0_33] : memref<8x10xf32, #tpu.memory_space<vmem>>, vector<8x10xf32>
    tpu.vector_store %arg12[%c0_32, %c0_33], %44 {strides = array<i32>} : memref<8x10xf32, #tpu.memory_space<vmem>>, vector<8x10xf32>,
    return
  }
  func.func @transform_0(%arg0: i32) -> (i32, i32) {
    %c0_i32 = arith.constant 0 : i32
    %c0_i32_0 = arith.constant 0 : i32
    return %arg0, %c0_i32 : i32, i32
  }
  func.func @transform_1(%arg0: i32) -> (i32, i32) {
    %c0_i32 = arith.constant 0 : i32
    %c0_i32_0 = arith.constant 0 : i32
    %c0_i32_1 = arith.constant 0 : i32
    return %c0_i32, %c0_i32_0 : i32, i32
  }
  func.func @transform_2(%arg0: i32) -> (i32, i32) {
    %c0_i32 = arith.constant 0 : i32
    %c0_i32_0 = arith.constant 0 : i32
    %c0_i32_1 = arith.constant 0 : i32
    return %c0_i32, %c0_i32_0 : i32, i32
  }
  func.func @transform_3(%arg0: i32) -> (i32, i32) {
    %c0_i32 = arith.constant 0 : i32
    %c0_i32_0 = arith.constant 0 : i32
    %c0_i32_1 = arith.constant 0 : i32
    return %c0_i32, %c0_i32_0 : i32, i32
  }
  func.func @transform_4(%arg0: i32) -> (i32, i32) {
    %c0_i32 = arith.constant 0 : i32
    %c0_i32_0 = arith.constant 0 : i32
    %c0_i32_1 = arith.constant 0 : i32
    return %c0_i32, %c0_i32_0 : i32, i32
  }
  func.func @transform_5(%arg0: i32) -> (i32, i32) {
    %c0_i32 = arith.constant 0 : i32
    %c0_i32_0 = arith.constant 0 : i32
    %c0_i32_1 = arith.constant 0 : i32
    return %c0_i32, %c0_i32_0 : i32, i32
  }
  func.func @transform_6(%arg0: i32) -> (i32, i32) {
    %c0_i32 = arith.constant 0 : i32
    %c0_i32_0 = arith.constant 0 : i32
    %c0_i32_1 = arith.constant 0 : i32
    return %c0_i32, %c0_i32_0 : i32, i32
  }
  func.func @transform_7(%arg0: i32) -> (i32, i32) {
    %c0_i32 = arith.constant 0 : i32
    %c0_i32_0 = arith.constant 0 : i32
    %c0_i32_1 = arith.constant 0 : i32
    return %c0_i32, %c0_i32_0 : i32, i32
  }
  func.func @transform_8(%arg0: i32) -> (i32, i32) {
    %c0_i32 = arith.constant 0 : i32
    %c0_i32_0 = arith.constant 0 : i32
    %c0_i32_1 = arith.constant 0 : i32
    return %c0_i32, %c0_i32_0 : i32, i32
  }
  func.func @transform_9(%arg0: i32) -> (i32, i32) {
    %c0_i32 = arith.constant 0 : i32
    %c0_i32_0 = arith.constant 0 : i32
    %c0_i32_1 = arith.constant 0 : i32
    return %c0_i32, %c0_i32_0 : i32, i32
  }
  func.func @transform_10(%arg0: i32) -> (i32, i32) {
    %c0_i32 = arith.constant 0 : i32
    %c0_i32_0 = arith.constant 0 : i32
    %c0_i32_1 = arith.constant 0 : i32
    return %c0_i32, %c0_i32_0 : i32, i32
  }
  func.func @transform_11(%arg0: i32) -> (i32, i32) {
    %c0_i32 = arith.constant 0 : i32
    %c0_i32_0 = arith.constant 0 : i32
    return %arg0, %c0_i32 : i32, i32
  }
}

</mosaic_0001>

<llo_original>
// kernel: net_forward.1
$region0: #{net_forward.1}
  #allocation0 [shape = 'u32[]', space=smem, size = 0x4, offset = 0x4, fixed_abs, tag = 'smem constant byte address 0x4 - core index']
  #allocation1 [shape = 'u32[144,128]{1,0:T(1,128)}', space=vmem, size = 0x12000, scoped, tag = 'internal scratch']
  %s0 = inlined_call_operand.vmem [shape: bf16[8,32], index: 0, kind: input, shape index: {}]
  %s1 = inlined_call_operand.hbm [shape: bf16[32,256], index: 1, kind: input, shape index: {}]
  %s2 = inlined_call_operand.vmem [shape: f32[1,256], index: 2, kind: input, shape index: {}]
  %s3 = inlined_call_operand.hbm [shape: bf16[256,128], index: 3, kind: input, shape index: {}]
  %s4 = inlined_call_operand.vmem [shape: f32[1,128], index: 4, kind: input, shape index: {}]
  %s5 = inlined_call_operand.vmem [shape: bf16[128,128], index: 5, kind: input, shape index: {}]
  %s6 = inlined_call_operand.vmem [shape: f32[1,128], index: 6, kind: input, shape index: {}]
  %s7 = inlined_call_operand.hbm [shape: bf16[128,128], index: 7, kind: input, shape index: {}]
  %s8 = inlined_call_operand.vmem [shape: f32[1,128], index: 8, kind: input, shape index: {}]
  %s9 = inlined_call_operand.vmem [shape: bf16[128,10], index: 9, kind: input, shape index: {}]
  %s10 = inlined_call_operand.vmem [shape: f32[1,10], index: 10, kind: input, shape index: {}]
  %s11 = inlined_call_operand.hbm [shape: f32[8,10], index: 11, kind: output, shape index: {}]
  %s12 = sld [smem:[#allocation0]]
  $region66: #{net_forward.1} parent=0
    _
  %s14 = ssub.s32 1, %s12
  %s15 = scalar_select 0, %s14, %s12
  $region1: #{net_forward.1} parent=0
    #allocation2 [shape = 'u8[16384]{0}', space=vmem, size = 0x4000, scoped, tag = 'input window, operand 1, single buffered']
    #allocation3 [shape = 's32[1]{0}', space=sflag, size = 0x4, scoped, tag = 'scoped memory for net_forward.1']
    #allocation4 [shape = 's32[1]{0}', space=sflag, size = 0x4, scoped, tag = 'scoped memory for net_forward.1']
    #allocation5 [shape = 'u8[65536]{0}', space=vmem, size = 0x10000, scoped, tag = 'input window, operand 3, single buffered']
    #allocation6 [shape = 's32[1]{0}', space=sflag, size = 0x4, scoped, tag = 'scoped memory for net_forward.1']
    #allocation7 [shape = 'u8[32768]{0}', space=vmem, size = 0x8000, scoped, tag = 'input window, operand 7, single buffered']
    #allocation8 [shape = 'u8[4096]{0}', space=vmem, size = 0x1000, scoped, tag = 'output window, operand 0, single buffered']
    %16 = vsyncpa [#allocation3], 0
    %17 = vsyncpa [#allocation6], 0
    %18 = vsyncpa [#allocation4], 0
    // Predicated region
    $region2: #{net_forward.1} parent=1 // pred_check
      _
    $region3: #{net_forward.1} parent=1 // pred_check_branch
      %20 = sbr.rel (0) target = $region5
    $region4: #{net_forward.1} parent=1 // pred_region
      _
    $region5: #{net_forward.1} parent=1 // pred_fallthru
      _
    // Predicated region
    $region6: #{net_forward.1} parent=1 // pred_check
      _
    $region7: #{net_forward.1} parent=1 // pred_check_branch
      %22 = sbr.rel (0) target = $region9
    $region8: #{net_forward.1} parent=1 // pred_region
      %s24 = ssub.s32 512, 512
      %25 = vsyncadd [#allocation3], %s24
      %s26 = sshll.u32 [#allocation2], 4
      %s27 = int_to_ptr.vmem [resolvable:$true] %s26
      %32 = dma.hbm_to_vmem [thread:$0]  %s1, 512, %s27, [#allocation3], 128, 128, 8
    $region9: #{net_forward.1} parent=1 // pred_fallthru
      _
    // Predicated region
    $region10: #{net_forward.1} parent=1 // pred_check
      _
    $region11: #{net_forward.1} parent=1 // pred_check_branch
      %34 = sbr.rel (0) target = $region13
    $region12: #{net_forward.1} parent=1 // pred_region
      _
    $region13: #{net_forward.1} parent=1 // pred_fallthru
      _
    // Predicated region
    $region14: #{net_forward.1} parent=1 // pred_check
      _
    $region15: #{net_forward.1} parent=1 // pred_check_branch
      %36 = sbr.rel (0) target = $region17
    $region16: #{net_forward.1} parent=1 // pred_region
      %s38 = ssub.s32 2048, 2048
      %39 = vsyncadd [#allocation6], %s38
      %s40 = sshll.u32 [#allocation5], 4
      %s41 = int_to_ptr.vmem [resolvable:$true] %s40
      %46 = dma.hbm_to_vmem [thread:$0]  %s3, 2048, %s41, [#allocation6], 64, 64, 4
    $region17: #{net_forward.1} parent=1 // pred_fallthru
      _
    // Predicated region
    $region18: #{net_forward.1} parent=1 // pred_check
      _
    $region19: #{net_forward.1} parent=1 // pred_check_branch
      %48 = sbr.rel (0) target = $region21
    $region20: #{net_forward.1} parent=1 // pred_region
      _
    $region21: #{net_forward.1} parent=1 // pred_fallthru
      _
    // Predicated region
    $region22: #{net_forward.1} parent=1 // pred_check
      _
    $region23: #{net_forward.1} parent=1 // pred_check_branch
      %50 = sbr.rel (0) target = $region25
    $region24: #{net_forward.1} parent=1 // pred_region
      _
    $region25: #{net_forward.1} parent=1 // pred_fallthru
      _
    // Predicated region
    $region26: #{net_forward.1} parent=1 // pred_check
      _
    $region27: #{net_forward.1} parent=1 // pred_check_branch
      %52 = sbr.rel (0) target = $region29
    $region28: #{net_forward.1} parent=1 // pred_region
      _
    $region29: #{net_forward.1} parent=1 // pred_fallthru
      _
    // Predicated region
    $region30: #{net_forward.1} parent=1 // pred_check
      _
    $region31: #{net_forward.1} parent=1 // pred_check_branch
      %54 = sbr.rel (0) target = $region33
    $region32: #{net_forward.1} parent=1 // pred_region
      %s56 = ssub.s32 1024, 1024
      %57 = vsyncadd [#allocation6], %s56
      %s58 = sshll.u32 [#allocation7], 4
      %s59 = int_to_ptr.vmem [resolvable:$true] %s58
      %64 = dma.hbm_to_vmem [thread:$0]  %s7, 1024, %s59, [#allocation6], 64, 64, 4
    $region33: #{net_forward.1} parent=1 // pred_fallthru
      _
    // Predicated region
    $region34: #{net_forward.1} parent=1 // pred_check
      _
    $region35: #{net_forward.1} parent=1 // pred_check_branch
      %66 = sbr.rel (0) target = $region37
    $region36: #{net_forward.1} parent=1 // pred_region
      _
    $region37: #{net_forward.1} parent=1 // pred_fallthru
      _
    // Predicated region
    $region38: #{net_forward.1} parent=1 // pred_check
      _
    $region39: #{net_forward.1} parent=1 // pred_check_branch
      %68 = sbr.rel (0) target = $region41
    $region40: #{net_forward.1} parent=1 // pred_region
      _
    $region41: #{net_forward.1} parent=1 // pred_fallthru
      _
    // Predicated region
    $region42: #{net_forward.1} parent=1 // pred_check
      _
    $region43: #{net_forward.1} parent=1 // pred_check_branch
      %70 = sbr.rel (0) target = $region45
    $region44: #{net_forward.1} parent=1 // pred_region
      _
    $region45: #{net_forward.1} parent=1 // pred_fallthru
      _
    // Predicated region
    $region46: #{net_forward.1} parent=1 // pred_check
      _
    $region47: #{net_forward.1} parent=1 // pred_check_branch
      %72 = sbr.rel (0) target = $region49
    $region48: #{net_forward.1} parent=1 // pred_region
      %73 = dma.done [#allocation3], 512
    $region49: #{net_forward.1} parent=1 // pred_fallthru
      _
    // Predicated region
    $region50: #{net_forward.1} parent=1 // pred_check
      _
    $region51: #{net_forward.1} parent=1 // pred_check_branch
      %75 = sbr.rel (0) target = $region53
    $region52: #{net_forward.1} parent=1 // pred_region
      %76 = dma.done [#allocation6], 2048
    $region53: #{net_forward.1} parent=1 // pred_fallthru
      _
    // Predicated region
    $region54: #{net_forward.1} parent=1 // pred_check
      _
    $region55: #{net_forward.1} parent=1 // pred_check_branch
      %78 = sbr.rel (0) target = $region57
    $region56: #{net_forward.1} parent=1 // pred_region
      %79 = dma.done [#allocation6], 1024
    $region57: #{net_forward.1} parent=1 // pred_fallthru
      _
    %v81 = vld [vmem:[%s0] sm:$0xf]
    %v82 = vld [vmem:[#allocation2] sm:$0xff]
    %v83 = vld [vmem:[#allocation2 + $0x8] sm:$0xff]
    %v84 = vld [vmem:[#allocation2 + $0x10] sm:$0xff]
    %v85 = vld [vmem:[#allocation2 + $0x18] sm:$0xff]
    %v86 = vld [vmem:[%s2] sm:$0x3]
    %v88 = vlaneseq
    %v89 = vshrl.u32 %v88, 7
    %v90 = vsub.s32 0, %v89
    %v91 = vrot.slane %v86, %v90
    %v92 = vlaneseq
    %v93 = vshrl.u32 %v92, 7
    %v94 = vsub.s32 1, %v93
    %v95 = vrot.slane %v86, %v94
    %v102 = vunpack.c.l.b16 %v82
    %v103 = vunpack.c.h.b16 %v82
    %v104 = vunpack.c.l.b16 %v83
    %v105 = vunpack.c.h.b16 %v83
    %v106 = vunpack.c.l.b16 %v84
    %v107 = vunpack.c.h.b16 %v84
    %v108 = vunpack.c.l.b16 %v85
    %v109 = vunpack.c.h.b16 %v85
    %v110 = vpack.c.b16 %v104, %v102
    %v111 = vpack.c.b16 %v105, %v103
    %v112 = vpack.c.b16 %v108, %v106
    %v113 = vpack.c.b16 %v109, %v107
    %vm118 = vcmask 261120
    %v120 = vsel %vm118, %v81, 0
    %122 = vmatprep.subr.bf16.mxu0 0
    %123 = vmatpush1.bf16.msra.mxu0 0
    %124 = vmatprep.subr.bf16.mxu0 0
    %125 = vmatpush1.bf16.msra.mxu0 0
    %126 = vmatprep.subr.bf16.mxu0 0
    %127 = vmatpush1.bf16.msra.mxu0 0
    %128 = vmatprep.subr.bf16.mxu0 0
    %129 = vmatpush1.bf16.msra.mxu0 0
    %130 = vmatprep.subr.bf16.mxu0 0
    %131 = vmatpush1.bf16.msra.mxu0 0
    %132 = vmatprep.subr.bf16.mxu0 0
    %133 = vmatpush1.bf16.msra.mxu0 0
    %134 = vmatprep.subr.bf16.mxu0 %v113
    %135 = vmatpush1.bf16.msra.mxu0 %v112
    %136 = vmatprep.subr.bf16.mxu0 %v111
    %137 = vmatpush1.bf16.msra.mxu0 %v110
    %138 = vmatprep.subr.bf16.mxu0 0
    %139 = vmatpush2.bf16.msra.mxu0 0
    %140 = vmatprep.subr.bf16.mxu0 0
    %141 = vmatpush2.bf16.msra.mxu0 0
    %142 = vmatprep.subr.bf16.mxu0 0
    %143 = vmatpush2.bf16.msra.mxu0 0
    %144 = vmatprep.subr.bf16.mxu0 0
    %145 = vmatpush2.bf16.msra.mxu0 0
    %146 = vmatprep.subr.bf16.mxu0 0
    %147 = vmatpush2.bf16.msra.mxu0 0
    %148 = vmatprep.subr.bf16.mxu0 0
    %149 = vmatpush2.bf16.msra.mxu0 0
    %150 = vmatprep.subr.bf16.mxu0 0
    %151 = vmatpush2.bf16.msra.mxu0 0
    %152 = vmatprep.subr.bf16.mxu0 0
    %153 = vmatpush2.bf16.msra.mxu0 0
    %154 = vmatprep.mubr.bf16.mxu0 0
    %155 = vmatmul.mubr.bf16.gmra.mxu0 %v120
    %v156 = vpop.f32.mrf.mxu0
    %v157 = vadd.f32 %v91, %v156
    %v158 = vpop.f32.mrf.mxu0
    %v159 = vadd.f32 %v95, %v158
    %v160 = vpop.f32.mrf.mxu0
    %v161 = vpop.f32.mrf.mxu0
    %162 = vdwg.mxu0
    %v163 = vmax.f32 %v157, 0.0
    %v164 = vmax.f32 %v159, 0.0
    %v165 = vpack.c.bf16 %v163, %v163
    %v166 = vpack.c.bf16 %v164, %v164
    %v167 = vld [vmem:[#allocation5] sm:$0xf]
    %v168 = vld [vmem:[#allocation5 + $0x4] sm:$0xf]
    %v169 = vld [vmem:[#allocation5 + $0x8] sm:$0xf]
    %v170 = vld [vmem:[#allocation5 + $0xc] sm:$0xf]
    %v171 = vld [vmem:[#allocation5 + $0x10] sm:$0xf]
    %v172 = vld [vmem:[#allocation5 + $0x14] sm:$0xf]
    %v173 = vld [vmem:[#allocation5 + $0x18] sm:$0xf]
    %v174 = vld [vmem:[#allocation5 + $0x1c] sm:$0xf]
    %v175 = vld [vmem:[#allocation5 + $0x20] sm:$0xf]
    %v176 = vld [vmem:[#allocation5 + $0x24] sm:$0xf]
    %v177 = vld [vmem:[#allocation5 + $0x28] sm:$0xf]
    %v178 = vld [vmem:[#allocation5 + $0x2c] sm:$0xf]
    %v179 = vld [vmem:[#allocation5 + $0x30] sm:$0xf]
    %v180 = vld [vmem:[#allocation5 + $0x34] sm:$0xf]
    %v181 = vld [vmem:[#allocation5 + $0x38] sm:$0xf]
    %v182 = vld [vmem:[#allocation5 + $0x3c] sm:$0xf]
    %v183 = vld [vmem:[#allocation5 + $0x40] sm:$0xf]
    %v184 = vld [vmem:[#allocation5 + $0x44] sm:$0xf]
    %v185 = vld [vmem:[#allocation5 + $0x48] sm:$0xf]
    %v186 = vld [vmem:[#allocation5 + $0x4c] sm:$0xf]
    %v187 = vld [vmem:[#allocation5 + $0x50] sm:$0xf]
    %v188 = vld [vmem:[#allocation5 + $0x54] sm:$0xf]
    %v189 = vld [vmem:[#allocation5 + $0x58] sm:$0xf]
    %v190 = vld [vmem:[#allocation5 + $0x5c] sm:$0xf]
    %v191 = vld [vmem:[#allocation5 + $0x60] sm:$0xf]
    %v192 = vld [vmem:[#allocation5 + $0x64] sm:$0xf]
    %v193 = vld [vmem:[#allocation5 + $0x68] sm:$0xf]
    %v194 = vld [vmem:[#allocation5 + $0x6c] sm:$0xf]
    %v195 = vld [vmem:[#allocation5 + $0x70] sm:$0xf]
    %v196 = vld [vmem:[#allocation5 + $0x74] sm:$0xf]
    %v197 = vld [vmem:[#allocation5 + $0x78] sm:$0xf]
    %v198 = vld [vmem:[#allocation5 + $0x7c] sm:$0xf]
    %v199 = vld [vmem:[%s4] sm:$0x1]
    %v201 = vlaneseq
    %v202 = vshrl.u32 %v201, 7
    %v203 = vsub.s32 0, %v202
    %v204 = vrot.slane %v199, %v203
    %v238 = vunpack.c.l.b16 %v167
    %v239 = vunpack.c.l.b16 %v168
    %v240 = vunpack.c.l.b16 %v169
    %v241 = vunpack.c.l.b16 %v170
    %v242 = vunpack.c.l.b16 %v171
    %v243 = vunpack.c.l.b16 %v172
    %v244 = vunpack.c.l.b16 %v173
    %v245 = vunpack.c.l.b16 %v174
    %v246 = vunpack.c.l.b16 %v175
    %v247 = vunpack.c.l.b16 %v176
    %v248 = vunpack.c.l.b16 %v177
    %v249 = vunpack.c.l.b16 %v178
    %v250 = vunpack.c.l.b16 %v179
    %v251 = vunpack.c.l.b16 %v180
    %v252 = vunpack.c.l.b16 %v181
    %v253 = vunpack.c.l.b16 %v182
    %v254 = vunpack.c.l.b16 %v183
    %v255 = vunpack.c.l.b16 %v184
    %v256 = vunpack.c.l.b16 %v185
    %v257 = vunpack.c.l.b16 %v186
    %v258 = vunpack.c.l.b16 %v187
    %v259 = vunpack.c.l.b16 %v188
    %v260 = vunpack.c.l.b16 %v189
    %v261 = vunpack.c.l.b16 %v190
    %v262 = vunpack.c.l.b16 %v191
    %v263 = vunpack.c.l.b16 %v192
    %v264 = vunpack.c.l.b16 %v193
    %v265 = vunpack.c.l.b16 %v194
    %v266 = vunpack.c.l.b16 %v195
    %v267 = vunpack.c.l.b16 %v196
    %v268 = vunpack.c.l.b16 %v197
    %v269 = vunpack.c.l.b16 %v198
    %v270 = vpack.c.b16 %v239, %v238
    %v271 = vpack.c.b16 %v241, %v240
    %v272 = vpack.c.b16 %v243, %v242
    %v273 = vpack.c.b16 %v245, %v244
    %v274 = vpack.c.b16 %v247, %v246
    %v275 = vpack.c.b16 %v249, %v248
    %v276 = vpack.c.b16 %v251, %v250
    %v277 = vpack.c.b16 %v253, %v252
    %v278 = vpack.c.b16 %v255, %v254
    %v279 = vpack.c.b16 %v257, %v256
    %v280 = vpack.c.b16 %v259, %v258
    %v281 = vpack.c.b16 %v261, %v260
    %v282 = vpack.c.b16 %v263, %v262
    %v283 = vpack.c.b16 %v265, %v264
    %v284 = vpack.c.b16 %v267, %v266
    %v285 = vpack.c.b16 %v269, %v268
    %302 = vmatprep.subr.bf16.mxu0 0
    %303 = vmatpush1.bf16.msra.mxu0 %v277
    %304 = vmatprep.subr.bf16.mxu0 0
    %305 = vmatpush1.bf16.msra.mxu0 %v276
    %306 = vmatprep.subr.bf16.mxu0 0
    %307 = vmatpush1.bf16.msra.mxu0 %v275
    %308 = vmatprep.subr.bf16.mxu0 0
    %309 = vmatpush1.bf16.msra.mxu0 %v274
    %310 = vmatprep.subr.bf16.mxu0 0
    %311 = vmatpush1.bf16.msra.mxu0 %v273
    %312 = vmatprep.subr.bf16.mxu0 0
    %313 = vmatpush1.bf16.msra.mxu0 %v272
    %314 = vmatprep.subr.bf16.mxu0 0
    %315 = vmatpush1.bf16.msra.mxu0 %v271
    %316 = vmatprep.subr.bf16.mxu0 0
    %317 = vmatpush1.bf16.msra.mxu0 %v270
    %318 = vmatprep.subr.bf16.mxu0 0
    %319 = vmatpush2.bf16.msra.mxu0 %v285
    %320 = vmatprep.subr.bf16.mxu0 0
    %321 = vmatpush2.bf16.msra.mxu0 %v284
    %322 = vmatprep.subr.bf16.mxu0 0
    %323 = vmatpush2.bf16.msra.mxu0 %v283
    %324 = vmatprep.subr.bf16.mxu0 0
    %325 = vmatpush2.bf16.msra.mxu0 %v282
    %326 = vmatprep.subr.bf16.mxu0 0
    %327 = vmatpush2.bf16.msra.mxu0 %v281
    %328 = vmatprep.subr.bf16.mxu0 0
    %329 = vmatpush2.bf16.msra.mxu0 %v280
    %330 = vmatprep.subr.bf16.mxu0 0
    %331 = vmatpush2.bf16.msra.mxu0 %v279
    %332 = vmatprep.subr.bf16.mxu0 0
    %333 = vmatpush2.bf16.msra.mxu0 %v278
    %334 = vmatprep.mubr.bf16.mxu0 %v166
    %335 = vmatmul.mubr.bf16.gmra.mxu0 %v165
    %v336 = vpop.f32.mrf.mxu0
    %v337 = vadd.f32 %v204, %v336
    %v338 = vpop.f32.mrf.mxu0
    %v339 = vpop.f32.mrf.mxu0
    %v340 = vpop.f32.mrf.mxu0
    %341 = vdwg.mxu0
    %v342 = vmax.f32 %v337, 0.0
    %v343 = vpack.c.bf16 %v342, %v342
    %v344 = vld [vmem:[%s5] sm:$0xf]
    %v345 = vld [vmem:[%s5 + $0x4] sm:$0xf]
    %v346 = vld [vmem:[%s5 + $0x8] sm:$0xf]
    %v347 = vld [vmem:[%s5 + $0xc] sm:$0xf]
    %v348 = vld [vmem:[%s5 + $0x10] sm:$0xf]
    %v349 = vld [vmem:[%s5 + $0x14] sm:$0xf]
    %v350 = vld [vmem:[%s5 + $0x18] sm:$0xf]
    %v351 = vld [vmem:[%s5 + $0x1c] sm:$0xf]
    %v352 = vld [vmem:[%s5 + $0x20] sm:$0xf]
    %v353 = vld [vmem:[%s5 + $0x24] sm:$0xf]
    %v354 = vld [vmem:[%s5 + $0x28] sm:$0xf]
    %v355 = vld [vmem:[%s5 + $0x2c] sm:$0xf]
    %v356 = vld [vmem:[%s5 + $0x30] sm:$0xf]
    %v357 = vld [vmem:[%s5 + $0x34] sm:$0xf]
    %v358 = vld [vmem:[%s5 + $0x38] sm:$0xf]
    %v359 = vld [vmem:[%s5 + $0x3c] sm:$0xf]
    %v360 = vld [vmem:[%s6] sm:$0x1]
    %v362 = vlaneseq
    %v363 = vshrl.u32 %v362, 7
    %v364 = vsub.s32 0, %v363
    %v365 = vrot.slane %v360, %v364
    %v383 = vunpack.c.l.b16 %v344
    %v384 = vunpack.c.l.b16 %v345
    %v385 = vunpack.c.l.b16 %v346
    %v386 = vunpack.c.l.b16 %v347
    %v387 = vunpack.c.l.b16 %v348
    %v388 = vunpack.c.l.b16 %v349
    %v389 = vunpack.c.l.b16 %v350
    %v390 = vunpack.c.l.b16 %v351
    %v391 = vunpack.c.l.b16 %v352
    %v392 = vunpack.c.l.b16 %v353
    %v393 = vunpack.c.l.b16 %v354
    %v394 = vunpack.c.l.b16 %v355
    %v395 = vunpack.c.l.b16 %v356
    %v396 = vunpack.c.l.b16 %v357
    %v397 = vunpack.c.l.b16 %v358
    %v398 = vunpack.c.l.b16 %v359
    %v399 = vpack.c.b16 %v384, %v383
    %v400 = vpack.c.b16 %v386, %v385
    %v401 = vpack.c.b16 %v388, %v387
    %v402 = vpack.c.b16 %v390, %v389
    %v403 = vpack.c.b16 %v392, %v391
    %v404 = vpack.c.b16 %v394, %v393
    %v405 = vpack.c.b16 %v396, %v395
    %v406 = vpack.c.b16 %v398, %v397
    %415 = vmatprep.subr.bf16.mxu0 0
    %416 = vmatpush1.bf16.msra.mxu0 %v406
    %417 = vmatprep.subr.bf16.mxu0 0
    %418 = vmatpush1.bf16.msra.mxu0 %v405
    %419 = vmatprep.subr.bf16.mxu0 0
    %420 = vmatpush1.bf16.msra.mxu0 %v404
    %421 = vmatprep.subr.bf16.mxu0 0
    %422 = vmatpush1.bf16.msra.mxu0 %v403
    %423 = vmatprep.subr.bf16.mxu0 0
    %424 = vmatpush1.bf16.msra.mxu0 %v402
    %425 = vmatprep.subr.bf16.mxu0 0
    %426 = vmatpush1.bf16.msra.mxu0 %v401
    %427 = vmatprep.subr.bf16.mxu0 0
    %428 = vmatpush1.bf16.msra.mxu0 %v400
    %429 = vmatprep.subr.bf16.mxu0 0
    %430 = vmatpush1.bf16.msra.mxu0 %v399
    %431 = vmatprep.subr.bf16.mxu0 0
    %432 = vmatpush2.bf16.msra.mxu0 0
    %433 = vmatprep.subr.bf16.mxu0 0
    %434 = vmatpush2.bf16.msra.mxu0 0
    %435 = vmatprep.subr.bf16.mxu0 0
    %436 = vmatpush2.bf16.msra.mxu0 0
    %437 = vmatprep.subr.bf16.mxu0 0
    %438 = vmatpush2.bf16.msra.mxu0 0
    %439 = vmatprep.subr.bf16.mxu0 0
    %440 = vmatpush2.bf16.msra.mxu0 0
    %441 = vmatprep.subr.bf16.mxu0 0
    %442 = vmatpush2.bf16.msra.mxu0 0
    %443 = vmatprep.subr.bf16.mxu0 0
    %444 = vmatpush2.bf16.msra.mxu0 0
    %445 = vmatprep.subr.bf16.mxu0 0
    %446 = vmatpush2.bf16.msra.mxu0 0
    %447 = vmatprep.mubr.bf16.mxu0 0
    %448 = vmatmul.mubr.bf16.gmra.mxu0 %v343
    %v449 = vpop.f32.mrf.mxu0
    %v450 = vadd.f32 %v365, %v449
    %v451 = vpop.f32.mrf.mxu0
    %v452 = vpop.f32.mrf.mxu0
    %v453 = vpop.f32.mrf.mxu0
    %454 = vdwg.mxu0
    %v455 = vmax.f32 %v450, 0.0
    %v456 = vpack.c.bf16 %v455, %v455
    %v457 = vld [vmem:[#allocation7] sm:$0xf]
    %v458 = vld [vmem:[#allocation7 + $0x4] sm:$0xf]
    %v459 = vld [vmem:[#allocation7 + $0x8] sm:$0xf]
    %v460 = vld [vmem:[#allocation7 + $0xc] sm:$0xf]
    %v461 = vld [vmem:[#allocation7 + $0x10] sm:$0xf]
    %v462 = vld [vmem:[#allocation7 + $0x14] sm:$0xf]
    %v463 = vld [vmem:[#allocation7 + $0x18] sm:$0xf]
    %v464 = vld [vmem:[#allocation7 + $0x1c] sm:$0xf]
    %v465 = vld [vmem:[#allocation7 + $0x20] sm:$0xf]
    %v466 = vld [vmem:[#allocation7 + $0x24] sm:$0xf]
    %v467 = vld [vmem:[#allocation7 + $0x28] sm:$0xf]
    %v468 = vld [vmem:[#allocation7 + $0x2c] sm:$0xf]
    %v469 = vld [vmem:[#allocation7 + $0x30] sm:$0xf]
    %v470 = vld [vmem:[#allocation7 + $0x34] sm:$0xf]
    %v471 = vld [vmem:[#allocation7 + $0x38] sm:$0xf]
    %v472 = vld [vmem:[#allocation7 + $0x3c] sm:$0xf]
    %v473 = vld [vmem:[%s8] sm:$0x1]
    %v475 = vlaneseq
    %v476 = vshrl.u32 %v475, 7
    %v477 = vsub.s32 0, %v476
    %v478 = vrot.slane %v473, %v477
    %v496 = vunpack.c.l.b16 %v457
    %v497 = vunpack.c.l.b16 %v458
    %v498 = vunpack.c.l.b16 %v459
    %v499 = vunpack.c.l.b16 %v460
    %v500 = vunpack.c.l.b16 %v461
    %v501 = vunpack.c.l.b16 %v462
    %v502 = vunpack.c.l.b16 %v463
    %v503 = vunpack.c.l.b16 %v464
    %v504 = vunpack.c.l.b16 %v465
    %v505 = vunpack.c.l.b16 %v466
    %v506 = vunpack.c.l.b16 %v467
    %v507 = vunpack.c.l.b16 %v468
    %v508 = vunpack.c.l.b16 %v469
    %v509 = vunpack.c.l.b16 %v470
    %v510 = vunpack.c.l.b16 %v471
    %v511 = vunpack.c.l.b16 %v472
    %v512 = vpack.c.b16 %v497, %v496
    %v513 = vpack.c.b16 %v499, %v498
    %v514 = vpack.c.b16 %v501, %v500
    %v515 = vpack.c.b16 %v503, %v502
    %v516 = vpack.c.b16 %v505, %v504
    %v517 = vpack.c.b16 %v507, %v506
    %v518 = vpack.c.b16 %v509, %v508
    %v519 = vpack.c.b16 %v511, %v510
    %528 = vmatprep.subr.bf16.mxu0 0
    %529 = vmatpush1.bf16.msra.mxu0 %v519
    %530 = vmatprep.subr.bf16.mxu0 0
    %531 = vmatpush1.bf16.msra.mxu0 %v518
    %532 = vmatprep.subr.bf16.mxu0 0
    %533 = vmatpush1.bf16.msra.mxu0 %v517
    %534 = vmatprep.subr.bf16.mxu0 0
    %535 = vmatpush1.bf16.msra.mxu0 %v516
    %536 = vmatprep.subr.bf16.mxu0 0
    %537 = vmatpush1.bf16.msra.mxu0 %v515
    %538 = vmatprep.subr.bf16.mxu0 0
    %539 = vmatpush1.bf16.msra.mxu0 %v514
    %540 = vmatprep.subr.bf16.mxu0 0
    %541 = vmatpush1.bf16.msra.mxu0 %v513
    %542 = vmatprep.subr.bf16.mxu0 0
    %543 = vmatpush1.bf16.msra.mxu0 %v512
    %544 = vmatprep.subr.bf16.mxu0 0
    %545 = vmatpush2.bf16.msra.mxu0 0
    %546 = vmatprep.subr.bf16.mxu0 0
    %547 = vmatpush2.bf16.msra.mxu0 0
    %548 = vmatprep.subr.bf16.mxu0 0
    %549 = vmatpush2.bf16.msra.mxu0 0
    %550 = vmatprep.subr.bf16.mxu0 0
    %551 = vmatpush2.bf16.msra.mxu0 0
    %552 = vmatprep.subr.bf16.mxu0 0
    %553 = vmatpush2.bf16.msra.mxu0 0
    %554 = vmatprep.subr.bf16.mxu0 0
    %555 = vmatpush2.bf16.msra.mxu0 0
    %556 = vmatprep.subr.bf16.mxu0 0
    %557 = vmatpush2.bf16.msra.mxu0 0
    %558 = vmatprep.subr.bf16.mxu0 0
    %559 = vmatpush2.bf16.msra.mxu0 0
    %560 = vmatprep.mubr.bf16.mxu0 0
    %561 = vmatmul.mubr.bf16.gmra.mxu0 %v456
    %v562 = vpop.f32.mrf.mxu0
    %v563 = vadd.f32 %v478, %v562
    %v564 = vpop.f32.mrf.mxu0
    %v565 = vpop.f32.mrf.mxu0
    %v566 = vpop.f32.mrf.mxu0
    %567 = vdwg.mxu0
    %v568 = vmax.f32 %v563, 0.0
    %v569 = vpack.c.bf16 %v568, %v568
    %v570 = vld [vmem:[%s9] sm:$0xf]
    %v571 = vld [vmem:[%s9 + $0x4] sm:$0xf]
    %v572 = vld [vmem:[%s9 + $0x8] sm:$0xf]
    %v573 = vld [vmem:[%s9 + $0xc] sm:$0xf]
    %v574 = vld [vmem:[%s9 + $0x10] sm:$0xf]
    %v575 = vld [vmem:[%s9 + $0x14] sm:$0xf]
    %v576 = vld [vmem:[%s9 + $0x18] sm:$0xf]
    %v577 = vld [vmem:[%s9 + $0x1c] sm:$0xf]
    %v578 = vld [vmem:[%s9 + $0x20] sm:$0xf]
    %v579 = vld [vmem:[%s9 + $0x24] sm:$0xf]
    %v580 = vld [vmem:[%s9 + $0x28] sm:$0xf]
    %v581 = vld [vmem:[%s9 + $0x2c] sm:$0xf]
    %v582 = vld [vmem:[%s9 + $0x30] sm:$0xf]
    %v583 = vld [vmem:[%s9 + $0x34] sm:$0xf]
    %v584 = vld [vmem:[%s9 + $0x38] sm:$0xf]
    %v585 = vld [vmem:[%s9 + $0x3c] sm:$0xf]
    %v586 = vld [vmem:[%s10] sm:$0x1]
    %v588 = vlaneseq
    %v589 = vshrl.u32 %v588, 7
    %v590 = vsub.s32 0, %v589
    %v591 = vrot.slane %v586, %v590
    %v609 = vunpack.c.l.b16 %v570
    %v610 = vunpack.c.l.b16 %v571
    %v611 = vunpack.c.l.b16 %v572
    %v612 = vunpack.c.l.b16 %v573
    %v613 = vunpack.c.l.b16 %v574
    %v614 = vunpack.c.l.b16 %v575
    %v615 = vunpack.c.l.b16 %v576
    %v616 = vunpack.c.l.b16 %v577
    %v617 = vunpack.c.l.b16 %v578
    %v618 = vunpack.c.l.b16 %v579
    %v619 = vunpack.c.l.b16 %v580
    %v620 = vunpack.c.l.b16 %v581
    %v621 = vunpack.c.l.b16 %v582
    %v622 = vunpack.c.l.b16 %v583
    %v623 = vunpack.c.l.b16 %v584
    %v624 = vunpack.c.l.b16 %v585
    %v625 = vpack.c.b16 %v610, %v609
    %v626 = vpack.c.b16 %v612, %v611
    %v627 = vpack.c.b16 %v614, %v613
    %v628 = vpack.c.b16 %v616, %v615
    %v629 = vpack.c.b16 %v618, %v617
    %v630 = vpack.c.b16 %v620, %v619
    %v631 = vpack.c.b16 %v622, %v621
    %v632 = vpack.c.b16 %v624, %v623
    %641 = vmatprep.subr.bf16.mxu0 0
    %642 = vmatpush1.bf16.msra.mxu0 %v632
    %643 = vmatprep.subr.bf16.mxu0 0
    %644 = vmatpush1.bf16.msra.mxu0 %v631
    %645 = vmatprep.subr.bf16.mxu0 0
    %646 = vmatpush1.bf16.msra.mxu0 %v630
    %647 = vmatprep.subr.bf16.mxu0 0
    %648 = vmatpush1.bf16.msra.mxu0 %v629
    %649 = vmatprep.subr.bf16.mxu0 0
    %650 = vmatpush1.bf16.msra.mxu0 %v628
    %651 = vmatprep.subr.bf16.mxu0 0
    %652 = vmatpush1.bf16.msra.mxu0 %v627
    %653 = vmatprep.subr.bf16.mxu0 0
    %654 = vmatpush1.bf16.msra.mxu0 %v626
    %655 = vmatprep.subr.bf16.mxu0 0
    %656 = vmatpush1.bf16.msra.mxu0 %v625
    %657 = vmatprep.subr.bf16.mxu0 0
    %658 = vmatpush2.bf16.msra.mxu0 0
    %659 = vmatprep.subr.bf16.mxu0 0
    %660 = vmatpush2.bf16.msra.mxu0 0
    %661 = vmatprep.subr.bf16.mxu0 0
    %662 = vmatpush2.bf16.msra.mxu0 0
    %663 = vmatprep.subr.bf16.mxu0 0
    %664 = vmatpush2.bf16.msra.mxu0 0
    %665 = vmatprep.subr.bf16.mxu0 0
    %666 = vmatpush2.bf16.msra.mxu0 0
    %667 = vmatprep.subr.bf16.mxu0 0
    %668 = vmatpush2.bf16.msra.mxu0 0
    %669 = vmatprep.subr.bf16.mxu0 0
    %670 = vmatpush2.bf16.msra.mxu0 0
    %671 = vmatprep.subr.bf16.mxu0 0
    %672 = vmatpush2.bf16.msra.mxu0 0
    %673 = vmatprep.mubr.bf16.mxu0 0
    %674 = vmatmul.mubr.bf16.gmra.mxu0 %v569
    %v675 = vpop.f32.mrf.mxu0
    %v676 = vadd.f32 %v591, %v675
    %v677 = vpop.f32.mrf.mxu0
    %v678 = vpop.f32.mrf.mxu0
    %v679 = vpop.f32.mrf.mxu0
    %680 = vdwg.mxu0
    %v681 = vsub.f32 0.0, %v676
    %v682 = vmul.f32 %v681, 1.442695
    %v683 = vpow.pop %v682
    %v684 = vadd.f32 %v683, 1.0
    %v685 = vrcp.pop %v684
    %v686 = vmul.f32 1.0, %v685
    %vm687 = vcmask 80896
    %688 = vst.msk [vmem:[#allocation8] sm:$0xff] %vm687, %v686
    // Predicated region
    $region58: #{net_forward.1} parent=1 // pred_check
      _
    $region59: #{net_forward.1} parent=1 // pred_check_branch
      %690 = sbr.rel (0) target = $region61
    $region60: #{net_forward.1} parent=1 // pred_region
      %s692 = ssub.s32 128, 128
      %693 = vsyncadd [#allocation4], %s692
      %s695 = sshll.u32 [#allocation8], 4
      %s696 = int_to_ptr.vmem [resolvable:$true] %s695
      %698 = dma.vmem_to_hbm [thread:$0]  %s696, 128, %s11, [#allocation4]
    $region61: #{net_forward.1} parent=1 // pred_fallthru
      _
    // Predicated region
    $region62: #{net_forward.1} parent=1 // pred_check
      _
    $region63: #{net_forward.1} parent=1 // pred_check_branch
      %700 = sbr.rel (0) target = $region65
    $region64: #{net_forward.1} parent=1 // pred_region
      %701 = dma.done [#allocation4], 128
    $region65: #{net_forward.1} parent=1 // pred_fallthru
      _
    %702 = vsyncpa [#allocation3], 1
    %703 = vsyncpa [#allocation6], 1
    %704 = vsyncpa [#allocation4], 1

</llo_original>
